<compile_context>
chip_gen: v6e
topology: v6e:2x2x1
jax: 0.10.0
libtpu: 0.0.40
codegen_flags: <defaults>
</compile_context>

<pallas_src>
import functools

import jax
import jax.numpy as jnp
from jax.experimental import pallas as pl
from jax.experimental.pallas import tpu as pltpu


def _round_up(n: int, m: int) -> int:
    return ((n + m - 1) // m) * m


# --------------------------------------------------------------------------- #
# Kernel
# --------------------------------------------------------------------------- #
def _mlp_kernel(x_ref, gamma_ref, beta_ref,
                w1_ref, b1_ref, w2_ref, b2_ref, w3_ref, b3_ref,
                out_ref, *, eps):
    # x_ref:     (B, D)    f32   unpadded input (full array in VMEM)
    # gamma/beta:(1, D)    f32   BatchNorm affine params
    # w1_ref:    (D, Hp)   bf16  fc1 weights, transposed, output dim zero-padded
    # b1_ref:    (1, Hp)   f32
    # w2_ref:    (Hp, Hp)  bf16
    # b2_ref:    (1, Hp)   f32
    # w3_ref:    (Hp, Ap)  bf16
    # b3_ref:    (1, Ap)   f32   (-1e30 in padded columns -> softmax-neutral)
    # out_ref:   (B, Ap)   f32   softmax probabilities (padded cols are exactly 0)

    x = x_ref[...]

    # --- BatchNorm1d (training-mode batch statistics, biased variance), f32 ---
    # Single-pass variance: E[x^2] - E[x]^2 (one axis-0 reduction sweep).
    mean = jnp.mean(x, axis=0, keepdims=True)
    mean_sq = jnp.mean(x * x, axis=0, keepdims=True)
    var = jnp.maximum(mean_sq - mean * mean, 0.0)
    xn = (x - mean) * jax.lax.rsqrt(var + eps)
    xn = xn * gamma_ref[...] + beta_ref[...]

    # --- fc1 + relu ---  (bf16 MXU operands, f32 accumulate, f32 elementwise)
    h1 = jnp.dot(xn.astype(jnp.bfloat16), w1_ref[...],
                 preferred_element_type=jnp.float32) + b1_ref[...]
    h1 = jnp.maximum(h1, 0.0)

    # --- fc2 + relu ---
    h2 = jnp.dot(h1.astype(jnp.bfloat16), w2_ref[...],
                 preferred_element_type=jnp.float32) + b2_ref[...]
    h2 = jnp.maximum(h2, 0.0)

    # --- fc3 (out_fn == identity for the default config) ---
    logits = jnp.dot(h2.astype(jnp.bfloat16), w3_ref[...],
                     preferred_element_type=jnp.float32) + b3_ref[...]

    # --- softmax over the feature axis (padded cols have -1e30 logits -> exp==0) ---
    m = jnp.max(logits, axis=1, keepdims=True)
    e = jnp.exp(logits - m)
    s = jnp.sum(e, axis=1, keepdims=True)
    out_ref[...] = e * pl.reciprocal(s, approx=False)


# --------------------------------------------------------------------------- #
# One-time parameter packing (done at init, NOT per forward call)
# --------------------------------------------------------------------------- #
def pack_params(params):
    """Transpose, zero-pad and bf16-cast the weights once. Returns packed tuple."""
    gamma, beta, w1, b1, w2, b2, w3, b3 = params
    H, D = w1.shape
    A = w3.shape[0]
    Hp, Ap = _round_up(H, 128), _round_up(A, 128)

    f32 = jnp.float32
    gamma_p = gamma.reshape(1, D).astype(f32)
    beta_p = beta.reshape(1, D).astype(f32)

    # Weights: transpose to (in, out), zero-pad feature dims to 128, cast to bf16.
    w1t = jnp.zeros((D, Hp), f32).at[:, :H].set(w1.T).astype(jnp.bfloat16)
    b1_p = jnp.zeros((1, Hp), f32).at[0, :H].set(b1)
    w2t = jnp.zeros((Hp, Hp), f32).at[:H, :H].set(w2.T).astype(jnp.bfloat16)
    b2_p = jnp.zeros((1, Hp), f32).at[0, :H].set(b2)
    w3t = jnp.zeros((Hp, Ap), f32).at[:H, :A].set(w3.T).astype(jnp.bfloat16)
    # Padded output columns get a huge negative bias so softmax ignores them exactly.
    b3_p = jnp.full((1, Ap), -1e30, f32).at[0, :A].set(b3)

    packed = (gamma_p, beta_p, w1t, b1_p, w2t, b2_p, w3t, b3_p)
    return jax.tree_util.tree_map(jax.block_until_ready, packed)


# --------------------------------------------------------------------------- #
# Forward (jitted): takes pre-packed params, returns padded (B, Ap) probabilities
# --------------------------------------------------------------------------- #
@functools.partial(jax.jit, static_argnames=("eps",))
def mlp_forward_packed(x, packed, *, eps=1e-5):
    gamma_p, beta_p, w1t, b1_p, w2t, b2_p, w3t, b3_p = packed
    B, D = x.shape
    Hp = w1t.shape[1]
    Ap = w3t.shape[1]
    x = x.astype(jnp.float32)

    kernel = functools.partial(_mlp_kernel, eps=eps)

    bytes_accessed = (
        x.size * 4 + gamma_p.size * 4 + beta_p.size * 4
        + w1t.size * 2 + b1_p.size * 4
        + w2t.size * 2 + b2_p.size * 4
        + w3t.size * 2 + b3_p.size * 4
        + B * Ap * 4
    )
    cost = pl.CostEstimate(
        flops=2 * B * (D * Hp + Hp * Hp + Hp * Ap),
        transcendentals=B * Ap + D + B,        # softmax exp + batchnorm rsqrt + recip
        bytes_accessed=bytes_accessed,
    )

    vmem_spec = pl.BlockSpec(memory_space=pltpu.MemorySpace.VMEM)
    out_p = pl.pallas_call(
        kernel,
        out_shape=jax.ShapeDtypeStruct((B, Ap), jnp.float32),
        in_specs=[vmem_spec] * 9,
        out_specs=vmem_spec,
        cost_estimate=cost,
    )(x, gamma_p, beta_p, w1t, b1_p, w2t, b2_p, w3t, b3_p)

    # Padded probability columns are exactly 0; consumers that need the narrow
    # (B, out_dim) view slice it themselves (keeps this path lane-dense).
    return out_p


# --------------------------------------------------------------------------- #
# Init + references
# --------------------------------------------------------------------------- #
def init_params(key, input_dim, out_dim, hidden_dim):
    """PyTorch-style init: BatchNorm gamma=1/beta=0; Linear uniform(-1/sqrt(fan_in), +)."""
    keys = jax.random.split(key, 6)
    k1 = 1.0 / jnp.sqrt(input_dim)
    k2 = 1.0 / jnp.sqrt(hidden_dim)
    gamma = jnp.ones((input_dim,), jnp.float32)
    beta = jnp.zeros((input_dim,), jnp.float32)
    w1 = jax.random.uniform(keys[0], (hidden_dim, input_dim), jnp.float32, -k1, k1)
    b1 = jax.random.uniform(keys[1], (hidden_dim,), jnp.float32, -k1, k1)
    w2 = jax.random.uniform(keys[2], (hidden_dim, hidden_dim), jnp.float32, -k2, k2)
    b2 = jax.random.uniform(keys[3], (hidden_dim,), jnp.float32, -k2, k2)
    w3 = jax.random.uniform(keys[4], (out_dim, hidden_dim), jnp.float32, -k2, k2)
    b3 = jax.random.uniform(keys[5], (out_dim,), jnp.float32, -k2, k2)
    return (gamma, beta, w1, b1, w2, b2, w3, b3)


def reference_forward(x, params, *, eps=1e-5):
    """Pure-JAX f32 reference of the PyTorch forward (training-mode BatchNorm)."""
    gamma, beta, w1, b1, w2, b2, w3, b3 = params
    mean = jnp.mean(x, axis=0, keepdims=True)
    var = jnp.mean((x - mean) ** 2, axis=0, keepdims=True)
    xn = (x - mean) / jnp.sqrt(var + eps) * gamma + beta
    h1 = jax.nn.relu(xn @ w1.T + b1)
    h2 = jax.nn.relu(h1 @ w2.T + b2)
    logits = h2 @ w3.T + b3
    return jax.nn.softmax(logits, axis=1)


def matched_reference(x, params, *, eps=1e-5):
    """Reference with the same bf16 casts and one-pass variance as the kernel."""
    gamma, beta, w1, b1, w2, b2, w3, b3 = params
    mean = jnp.mean(x, axis=0, keepdims=True)
    mean_sq = jnp.mean(x * x, axis=0, keepdims=True)
    var = jnp.maximum(mean_sq - mean * mean, 0.0)
    xn = (x - mean) * jax.lax.rsqrt(var + eps) * gamma + beta
    bf = jnp.bfloat16
    h1 = jnp.maximum(jnp.dot(xn.astype(bf), w1.T.astype(bf),
                             preferred_element_type=jnp.float32) + b1, 0.0)
    h2 = jnp.maximum(jnp.dot(h1.astype(bf), w2.T.astype(bf),
                             preferred_element_type=jnp.float32) + b2, 0.0)
    logits = jnp.dot(h2.astype(bf), w3.T.astype(bf),
                     preferred_element_type=jnp.float32) + b3
    return jax.nn.softmax(logits, axis=1)


if __name__ == "__main__":
    B = 8           # batch (multiple of 8 -> clean f32 sublane tiling)
    IN_DIM = 16     # input_dim
    HIDDEN = 64     # hidden_dim (module default)
    OUT_DIM = 8     # out_dim

    key = jax.random.PRNGKey(0)
    kx, kp = jax.random.split(key)
    x = jax.random.normal(kx, (B, IN_DIM), jnp.float32)
    params = init_params(kp, IN_DIM, OUT_DIM, HIDDEN)

    # One-time packing (transpose / pad / bf16-cast) — never repeated per forward.
    packed = pack_params(params)

    out_padded = jax.block_until_ready(mlp_forward_packed(x, packed))
    assert out_padded.shape == (B, _round_up(OUT_DIM, 128))

    out = out_padded[:, :OUT_DIM]   # narrow view only needed for verification

    ref_bf16 = matched_reference(x, params)   # same bf16 casts -> tight match
    ref_f32 = reference_forward(x, params)    # pure f32 PyTorch semantics -> loose match

    assert jnp.allclose(out, ref_bf16, atol=2e-3, rtol=2e-3), "mismatch vs bf16-matched ref"
    assert jnp.allclose(out, ref_f32, atol=3e-2, rtol=3e-2), "mismatch vs f32 reference"
    assert jnp.allclose(jnp.sum(out, axis=1), 1.0, atol=1e-5), "softmax rows must sum to 1"
    assert jnp.all(out_padded[:, OUT_DIM:] == 0.0), "padded prob columns must be exactly 0"

    print("KERNEL_OK")
</pallas_src>

<mosaic_0001>
module attributes {stable_mosaic.version = 11 : i64} {
  func.func @_mlp_kernel(%arg0: memref<8x16xf32, #tpu.memory_space<vmem>>, %arg1: memref<1x16xf32, #tpu.memory_space<vmem>>, %arg2: memref<1x16xf32, #tpu.memory_space<vmem>>, %arg3: memref<16x128xbf16, #tpu.memory_space<vmem>>, %arg4: memref<1x128xf32, #tpu.memory_space<vmem>>, %arg5: memref<128x128xbf16, #tpu.memory_space<vmem>>, %arg6: memref<1x128xf32, #tpu.memory_space<vmem>>, %arg7: memref<128x128xbf16, #tpu.memory_space<vmem>>, %arg8: memref<1x128xf32, #tpu.memory_space<vmem>>, %arg9: memref<8x128xf32, #tpu.memory_space<vmem>>) attributes {dimension_semantics = [], scalar_prefetch = 0 : i64, scratch_operands = 0 : i64, tpu.core_type = #tpu.core_type<tc>} {
    %c0 = arith.constant 0 : index
    %c0_0 = arith.constant 0 : index
    %0 = vector.load %arg0[%c0, %c0_0] : memref<8x16xf32, #tpu.memory_space<vmem>>, vector<8x16xf32>
    %cst = arith.constant dense<0.000000e+00> : vector<16xf32>
    %1 = vector.multi_reduction <add>, %0, %cst [0] : vector<8x16xf32> to vector<16xf32>
    %2 = vector.shape_cast %1 : vector<16xf32> to vector<1x16xf32>
    %cst_1 = arith.constant 8.000000e+00 : f32
    %3 = vector.broadcast %cst_1 : f32 to vector<1x16xf32>
    %4 = arith.divf %2, %3 : vector<1x16xf32>
    %5 = arith.mulf %0, %0 : vector<8x16xf32>
    %cst_2 = arith.constant dense<0.000000e+00> : vector<16xf32>
    %6 = vector.multi_reduction <add>, %5, %cst_2 [0] : vector<8x16xf32> to vector<16xf32>
    %7 = vector.shape_cast %6 : vector<16xf32> to vector<1x16xf32>
    %cst_3 = arith.constant 8.000000e+00 : f32
    %8 = vector.broadcast %cst_3 : f32 to vector<1x16xf32>
    %9 = arith.divf %7, %8 : vector<1x16xf32>
    %10 = arith.mulf %4, %4 : vector<1x16xf32>
    %11 = arith.subf %9, %10 : vector<1x16xf32>
    %cst_4 = arith.constant 0.000000e+00 : f32
    %12 = vector.broadcast %cst_4 : f32 to vector<1x16xf32>
    %13 = arith.maximumf %11, %12 : vector<1x16xf32>
    %14 = vector.broadcast %4 : vector<1x16xf32> to vector<8x16xf32>
    %15 = arith.subf %0, %14 : vector<8x16xf32>
    %cst_5 = arith.constant 9.99999974E-6 : f32
    %16 = vector.broadcast %cst_5 : f32 to vector<1x16xf32>
    %17 = arith.addf %13, %16 : vector<1x16xf32>
    %18 = math.rsqrt %17 : vector<1x16xf32>
    %19 = vector.broadcast %18 : vector<1x16xf32> to vector<8x16xf32>
    %20 = arith.mulf %15, %19 : vector<8x16xf32>
    %c0_6 = arith.constant 0 : index
    %c0_7 = arith.constant 0 : index
    %21 = vector.load %arg1[%c0_6, %c0_7] : memref<1x16xf32, #tpu.memory_space<vmem>>, vector<1x16xf32>
    %22 = vector.broadcast %21 : vector<1x16xf32> to vector<8x16xf32>
    %23 = arith.mulf %20, %22 : vector<8x16xf32>
    %c0_8 = arith.constant 0 : index
    %c0_9 = arith.constant 0 : index
    %24 = vector.load %arg2[%c0_8, %c0_9] : memref<1x16xf32, #tpu.memory_space<vmem>>, vector<1x16xf32>
    %25 = vector.broadcast %24 : vector<1x16xf32> to vector<8x16xf32>
    %26 = arith.addf %23, %25 : vector<8x16xf32>
    %27 = arith.truncf %26 : vector<8x16xf32> to vector<8x16xbf16>
    %c0_10 = arith.constant 0 : index
    %c0_11 = arith.constant 0 : index
    %28 = vector.load %arg3[%c0_10, %c0_11] : memref<16x128xbf16, #tpu.memory_space<vmem>>, vector<16x128xbf16>
    %cst_12 = arith.constant dense<0.000000e+00> : vector<8x128xf32>
    %29 = tpu.matmul %27, %28, %cst_12 {dimension_numbers = #tpu.dot_dimension_numbers<[1], [0], [0], [1], [0, 0, 1, 1], [], []>} : vector<8x16xbf16>, vector<16x128xbf16>, vector<8x128xf32> -> vector<8x128xf32>
    %c0_13 = arith.constant 0 : index
    %c0_14 = arith.constant 0 : index
    %30 = vector.load %arg4[%c0_13, %c0_14] : memref<1x128xf32, #tpu.memory_space<vmem>>, vector<1x128xf32>
    %31 = vector.broadcast %30 : vector<1x128xf32> to vector<8x128xf32>
    %32 = arith.addf %29, %31 : vector<8x128xf32>
    %cst_15 = arith.constant 0.000000e+00 : f32
    %33 = vector.broadcast %cst_15 : f32 to vector<8x128xf32>
    %34 = arith.maximumf %32, %33 : vector<8x128xf32>
    %35 = arith.truncf %34 : vector<8x128xf32> to vector<8x128xbf16>
    %c0_16 = arith.constant 0 : index
    %c0_17 = arith.constant 0 : index
    %36 = vector.load %arg5[%c0_16, %c0_17] : memref<128x128xbf16, #tpu.memory_space<vmem>>, vector<128x128xbf16>
    %cst_18 = arith.constant dense<0.000000e+00> : vector<8x128xf32>
    %37 = tpu.matmul %35, %36, %cst_18 {dimension_numbers = #tpu.dot_dimension_numbers<[1], [0], [0], [1], [0, 0, 1, 1], [], []>} : vector<8x128xbf16>, vector<128x128xbf16>, vector<8x128xf32> -> vector<8x128xf32>
    %c0_19 = arith.constant 0 : index
    %c0_20 = arith.constant 0 : index
    %38 = vector.load %arg6[%c0_19, %c0_20] : memref<1x128xf32, #tpu.memory_space<vmem>>, vector<1x128xf32>
    %39 = vector.broadcast %38 : vector<1x128xf32> to vector<8x128xf32>
    %40 = arith.addf %37, %39 : vector<8x128xf32>
    %cst_21 = arith.constant 0.000000e+00 : f32
    %41 = vector.broadcast %cst_21 : f32 to vector<8x128xf32>
    %42 = arith.maximumf %40, %41 : vector<8x128xf32>
    %43 = arith.truncf %42 : vector<8x128xf32> to vector<8x128xbf16>
    %c0_22 = arith.constant 0 : index
    %c0_23 = arith.constant 0 : index
    %44 = vector.load %arg7[%c0_22, %c0_23] : memref<128x128xbf16, #tpu.memory_space<vmem>>, vector<128x128xbf16>
    %cst_24 = arith.constant dense<0.000000e+00> : vector<8x128xf32>
    %45 = tpu.matmul %43, %44, %cst_24 {dimension_numbers = #tpu.dot_dimension_numbers<[1], [0], [0], [1], [0, 0, 1, 1], [], []>} : vector<8x128xbf16>, vector<128x128xbf16>, vector<8x128xf32> -> vector<8x128xf32>
    %c0_25 = arith.constant 0 : index
    %c0_26 = arith.constant 0 : index
    %46 = vector.load %arg8[%c0_25, %c0_26] : memref<1x128xf32, #tpu.memory_space<vmem>>, vector<1x128xf32>
    %47 = vector.broadcast %46 : vector<1x128xf32> to vector<8x128xf32>
    %48 = arith.addf %45, %47 : vector<8x128xf32>
    %cst_27 = arith.constant dense<0xFF800000> : vector<8xf32>
    %49 = vector.multi_reduction <maximumf>, %48, %cst_27 [1] : vector<8x128xf32> to vector<8xf32>
    %50 = vector.shape_cast %49 : vector<8xf32> to vector<8x1xf32>
    %51 = vector.broadcast %50 : vector<8x1xf32> to vector<8x128xf32>
    %52 = arith.subf %48, %51 : vector<8x128xf32>
    %53 = math.exp %52 : vector<8x128xf32>
    %cst_28 = arith.constant dense<0.000000e+00> : vector<8xf32>
    %54 = vector.multi_reduction <add>, %53, %cst_28 [1] : vector<8x128xf32> to vector<8xf32>
    %55 = vector.shape_cast %54 : vector<8xf32> to vector<8x1xf32>
    %56 = tpu.reciprocal %55 : vector<8x1xf32> -> vector<8x1xf32>
    %57 = vector.broadcast %56 : vector<8x1xf32> to vector<8x128xf32>
    %58 = arith.mulf %53, %57 : vector<8x128xf32>
    %c0_29 = arith.constant 0 : index
    %c0_30 = arith.constant 0 : index
    %59 = vector.load %arg9[%c0_29, %c0_30] : memref<8x128xf32, #tpu.memory_space<vmem>>, vector<8x128xf32>
    tpu.vector_store %arg9[%c0_29, %c0_30], %58 {strides = array<i32>} : memref<8x128xf32, #tpu.memory_space<vmem>>, vector<8x128xf32>,
    return
  }
}

</mosaic_0001>

<llo_original>
// kernel: mlp_forward_packed.1
$region0: #{mlp_forward_packed.1}
  #allocation0 [shape = 'u32[]', space=smem, size = 0x4, offset = 0x4, fixed_abs, tag = 'smem constant byte address 0x4 - core index']
  #allocation1 [shape = 'u32[144,128]{1,0:T(1,128)}', space=vmem, size = 0x12000, scoped, tag = 'internal scratch']
  %s0 = inlined_call_operand.hbm [shape: f32[8,16], index: 0, kind: input, shape index: {}]
  %s1 = inlined_call_operand.vmem [shape: f32[1,16], index: 1, kind: input, shape index: {}]
  %s2 = inlined_call_operand.vmem [shape: f32[1,16], index: 2, kind: input, shape index: {}]
  %s3 = inlined_call_operand.hbm [shape: bf16[16,128], index: 3, kind: input, shape index: {}]
  %s4 = inlined_call_operand.vmem [shape: f32[1,128], index: 4, kind: input, shape index: {}]
  %s5 = inlined_call_operand.hbm [shape: bf16[128,128], index: 5, kind: input, shape index: {}]
  %s6 = inlined_call_operand.vmem [shape: f32[1,128], index: 6, kind: input, shape index: {}]
  %s7 = inlined_call_operand.hbm [shape: bf16[128,128], index: 7, kind: input, shape index: {}]
  %s8 = inlined_call_operand.vmem [shape: f32[1,128], index: 8, kind: input, shape index: {}]
  %s9 = inlined_call_operand.hbm [shape: f32[8,128], index: 9, kind: output, shape index: {}]
  %s10 = sld [smem:[#allocation0]]
  $region62: #{mlp_forward_packed.1} parent=0
    _
  %s12 = ssub.s32 1, %s10
  %s13 = scalar_select 0, %s12, %s10
  $region1: #{mlp_forward_packed.1} parent=0
    #allocation2 [shape = 'u8[4096]{0}', space=vmem, size = 0x1000, scoped, tag = 'input window, operand 0, single buffered']
    #allocation3 [shape = 's32[1]{0}', space=sflag, size = 0x4, scoped, tag = 'scoped memory for mlp_forward_packed.1']
    #allocation4 [shape = 's32[1]{0}', space=sflag, size = 0x4, scoped, tag = 'scoped memory for mlp_forward_packed.1']
    #allocation5 [shape = 'u8[4096]{0}', space=vmem, size = 0x1000, scoped, tag = 'input window, operand 3, single buffered']
    #allocation6 [shape = 's32[1]{0}', space=sflag, size = 0x4, scoped, tag = 'scoped memory for mlp_forward_packed.1']
    #allocation7 [shape = 'u8[32768]{0}', space=vmem, size = 0x8000, scoped, tag = 'input window, operand 5, single buffered']
    #allocation8 [shape = 'u8[32768]{0}', space=vmem, size = 0x8000, scoped, tag = 'input window, operand 7, single buffered']
    #allocation9 [shape = 's32[1]{0}', space=sflag, size = 0x4, scoped, tag = 'scoped memory for mlp_forward_packed.1']
    #allocation10 [shape = 'u8[4096]{0}', space=vmem, size = 0x1000, scoped, tag = 'output window, operand 0, single buffered']
    %14 = vsyncpa [#allocation3], 0
    %15 = vsyncpa [#allocation6], 0
    %16 = vsyncpa [#allocation9], 0
    %17 = vsyncpa [#allocation4], 0
    // Predicated region
    $region2: #{mlp_forward_packed.1} parent=1 // pred_check
      _
    $region3: #{mlp_forward_packed.1} parent=1 // pred_check_branch
      %19 = sbr.rel (0) target = $region5
    $region4: #{mlp_forward_packed.1} parent=1 // pred_region
      %s21 = ssub.s32 128, 128
      %22 = vsyncadd [#allocation3], %s21
      %s24 = sshll.u32 [#allocation2], 4
      %s25 = int_to_ptr.vmem [resolvable:$true] %s24
      %27 = dma.hbm_to_vmem [thread:$0]  %s0, 128, %s25, [#allocation3]
    $region5: #{mlp_forward_packed.1} parent=1 // pred_fallthru
      _
    // Predicated region
    $region6: #{mlp_forward_packed.1} parent=1 // pred_check
      _
    $region7: #{mlp_forward_packed.1} parent=1 // pred_check_branch
      %29 = sbr.rel (0) target = $region9
    $region8: #{mlp_forward_packed.1} parent=1 // pred_region
      _
    $region9: #{mlp_forward_packed.1} parent=1 // pred_fallthru
      _
    // Predicated region
    $region10: #{mlp_forward_packed.1} parent=1 // pred_check
      _
    $region11: #{mlp_forward_packed.1} parent=1 // pred_check_branch
      %31 = sbr.rel (0) target = $region13
    $region12: #{mlp_forward_packed.1} parent=1 // pred_region
      _
    $region13: #{mlp_forward_packed.1} parent=1 // pred_fallthru
      _
    // Predicated region
    $region14: #{mlp_forward_packed.1} parent=1 // pred_check
      _
    $region15: #{mlp_forward_packed.1} parent=1 // pred_check_branch
      %33 = sbr.rel (0) target = $region17
    $region16: #{mlp_forward_packed.1} parent=1 // pred_region
      %s35 = ssub.s32 128, 128
      %36 = vsyncadd [#allocation6], %s35
      %s37 = sshll.u32 [#allocation5], 4
      %s38 = int_to_ptr.vmem [resolvable:$true] %s37
      %43 = dma.hbm_to_vmem [thread:$0]  %s3, 128, %s38, [#allocation6], 64, 64, 4
    $region17: #{mlp_forward_packed.1} parent=1 // pred_fallthru
      _
    // Predicated region
    $region18: #{mlp_forward_packed.1} parent=1 // pred_check
      _
    $region19: #{mlp_forward_packed.1} parent=1 // pred_check_branch
      %45 = sbr.rel (0) target = $region21
    $region20: #{mlp_forward_packed.1} parent=1 // pred_region
      _
    $region21: #{mlp_forward_packed.1} parent=1 // pred_fallthru
      _
    // Predicated region
    $region22: #{mlp_forward_packed.1} parent=1 // pred_check
      _
    $region23: #{mlp_forward_packed.1} parent=1 // pred_check_branch
      %47 = sbr.rel (0) target = $region25
    $region24: #{mlp_forward_packed.1} parent=1 // pred_region
      %s49 = ssub.s32 1024, 1024
      %50 = vsyncadd [#allocation6], %s49
      %s51 = sshll.u32 [#allocation7], 4
      %s52 = int_to_ptr.vmem [resolvable:$true] %s51
      %57 = dma.hbm_to_vmem [thread:$0]  %s5, 1024, %s52, [#allocation6], 64, 64, 4
    $region25: #{mlp_forward_packed.1} parent=1 // pred_fallthru
      _
    // Predicated region
    $region26: #{mlp_forward_packed.1} parent=1 // pred_check
      _
    $region27: #{mlp_forward_packed.1} parent=1 // pred_check_branch
      %59 = sbr.rel (0) target = $region29
    $region28: #{mlp_forward_packed.1} parent=1 // pred_region
      _
    $region29: #{mlp_forward_packed.1} parent=1 // pred_fallthru
      _
    // Predicated region
    $region30: #{mlp_forward_packed.1} parent=1 // pred_check
      _
    $region31: #{mlp_forward_packed.1} parent=1 // pred_check_branch
      %61 = sbr.rel (0) target = $region33
    $region32: #{mlp_forward_packed.1} parent=1 // pred_region
      %s63 = ssub.s32 1024, 1024
      %64 = vsyncadd [#allocation9], %s63
      %s65 = sshll.u32 [#allocation8], 4
      %s66 = int_to_ptr.vmem [resolvable:$true] %s65
      %71 = dma.hbm_to_vmem [thread:$0]  %s7, 1024, %s66, [#allocation9], 64, 64, 4
    $region33: #{mlp_forward_packed.1} parent=1 // pred_fallthru
      _
    // Predicated region
    $region34: #{mlp_forward_packed.1} parent=1 // pred_check
      _
    $region35: #{mlp_forward_packed.1} parent=1 // pred_check_branch
      %73 = sbr.rel (0) target = $region37
    $region36: #{mlp_forward_packed.1} parent=1 // pred_region
      _
    $region37: #{mlp_forward_packed.1} parent=1 // pred_fallthru
      _
    // Predicated region
    $region38: #{mlp_forward_packed.1} parent=1 // pred_check
      _
    $region39: #{mlp_forward_packed.1} parent=1 // pred_check_branch
      %75 = sbr.rel (0) target = $region41
    $region40: #{mlp_forward_packed.1} parent=1 // pred_region
      %76 = dma.done [#allocation3], 128
    $region41: #{mlp_forward_packed.1} parent=1 // pred_fallthru
      _
    // Predicated region
    $region42: #{mlp_forward_packed.1} parent=1 // pred_check
      _
    $region43: #{mlp_forward_packed.1} parent=1 // pred_check_branch
      %78 = sbr.rel (0) target = $region45
    $region44: #{mlp_forward_packed.1} parent=1 // pred_region
      %79 = dma.done [#allocation6], 128
    $region45: #{mlp_forward_packed.1} parent=1 // pred_fallthru
      _
    // Predicated region
    $region46: #{mlp_forward_packed.1} parent=1 // pred_check
      _
    $region47: #{mlp_forward_packed.1} parent=1 // pred_check_branch
      %81 = sbr.rel (0) target = $region49
    $region48: #{mlp_forward_packed.1} parent=1 // pred_region
      %82 = dma.done [#allocation6], 1024
    $region49: #{mlp_forward_packed.1} parent=1 // pred_fallthru
      _
    // Predicated region
    $region50: #{mlp_forward_packed.1} parent=1 // pred_check
      _
    $region51: #{mlp_forward_packed.1} parent=1 // pred_check_branch
      %84 = sbr.rel (0) target = $region53
    $region52: #{mlp_forward_packed.1} parent=1 // pred_region
      %85 = dma.done [#allocation9], 1024
    $region53: #{mlp_forward_packed.1} parent=1 // pred_fallthru
      _
    %v87 = vld [vmem:[#allocation2] sm:$0xff]
    %vm88 = vcmask 130048
    %v89 = vsel %vm88, %v87, 0.0
    %v90 = vrot.slane %v89, 4
    %v91 = vadd.f32 %v89, %v90
    %v92 = vrot.slane %v91, 2
    %v93 = vadd.f32 %v91, %v92
    %v94 = vrot.slane %v93, 1
    %v95 = vadd.f32 %v93, %v94
    %v96 = vrcp.pop 8.0
    %v97 = vmul.f32 %v95, %v96
    %v98 = vmul.f32 %v87, %v87
    %v99 = vsel %vm88, %v98, 0.0
    %v100 = vrot.slane %v99, 4
    %v101 = vadd.f32 %v99, %v100
    %v102 = vrot.slane %v101, 2
    %v103 = vadd.f32 %v101, %v102
    %v104 = vrot.slane %v103, 1
    %v105 = vadd.f32 %v103, %v104
    %v106 = vmul.f32 %v105, %v96
    %v107 = vmul.f32 %v97, %v97
    %v108 = vsub.f32 %v106, %v107
    %v109 = vmax.f32 %v108, 0.0
    %v110 = vsub.f32 %v87, %v97
    %v111 = vadd.f32 %v109, 1e-05
    %v112 = vrsqrt.pop %v111
    %v113 = vmul.f32 %v110, %v112
    %v114 = vld [vmem:[%s1] sm:$0x1]
    %v116 = vlaneseq
    %v117 = vshrl.u32 %v116, 7
    %v118 = vsub.s32 0, %v117
    %v119 = vrot.slane %v114, %v118
    %v121 = vmul.f32 %v113, %v119
    %v122 = vld [vmem:[%s2] sm:$0x1]
    %v124 = vlaneseq
    %v125 = vshrl.u32 %v124, 7
    %v126 = vsub.s32 0, %v125
    %v127 = vrot.slane %v122, %v126
    %v129 = vadd.f32 %v121, %v127
    %v130 = vpack.c.bf16 %v129, %v129
    %v131 = vld [vmem:[#allocation5] sm:$0xf]
    %v132 = vld [vmem:[#allocation5 + $0x4] sm:$0xf]
    %v133 = vld [vmem:[%s4] sm:$0x1]
    %v135 = vlaneseq
    %v136 = vshrl.u32 %v135, 7
    %v137 = vsub.s32 0, %v136
    %v138 = vrot.slane %v133, %v137
    %v142 = vunpack.c.l.b16 %v131
    %v143 = vunpack.c.l.b16 %v132
    %v144 = vpack.c.b16 %v143, %v142
    %v147 = vsel %vm88, %v130, 0
    %149 = vmatprep.subr.bf16.mxu0 0
    %150 = vmatpush1.bf16.msra.mxu0 0
    %151 = vmatprep.subr.bf16.mxu0 0
    %152 = vmatpush1.bf16.msra.mxu0 0
    %153 = vmatprep.subr.bf16.mxu0 0
    %154 = vmatpush1.bf16.msra.mxu0 0
    %155 = vmatprep.subr.bf16.mxu0 0
    %156 = vmatpush1.bf16.msra.mxu0 0
    %157 = vmatprep.subr.bf16.mxu0 0
    %158 = vmatpush1.bf16.msra.mxu0 0
    %159 = vmatprep.subr.bf16.mxu0 0
    %160 = vmatpush1.bf16.msra.mxu0 0
    %161 = vmatprep.subr.bf16.mxu0 0
    %162 = vmatpush1.bf16.msra.mxu0 0
    %163 = vmatprep.subr.bf16.mxu0 0
    %164 = vmatpush1.bf16.msra.mxu0 %v144
    %165 = vmatprep.subr.bf16.mxu0 0
    %166 = vmatpush2.bf16.msra.mxu0 0
    %167 = vmatprep.subr.bf16.mxu0 0
    %168 = vmatpush2.bf16.msra.mxu0 0
    %169 = vmatprep.subr.bf16.mxu0 0
    %170 = vmatpush2.bf16.msra.mxu0 0
    %171 = vmatprep.subr.bf16.mxu0 0
    %172 = vmatpush2.bf16.msra.mxu0 0
    %173 = vmatprep.subr.bf16.mxu0 0
    %174 = vmatpush2.bf16.msra.mxu0 0
    %175 = vmatprep.subr.bf16.mxu0 0
    %176 = vmatpush2.bf16.msra.mxu0 0
    %177 = vmatprep.subr.bf16.mxu0 0
    %178 = vmatpush2.bf16.msra.mxu0 0
    %179 = vmatprep.subr.bf16.mxu0 0
    %180 = vmatpush2.bf16.msra.mxu0 0
    %181 = vmatprep.mubr.bf16.mxu0 0
    %182 = vmatmul.mubr.bf16.gmra.mxu0 %v147
    %v183 = vpop.f32.mrf.mxu0
    %v184 = vadd.f32 %v138, %v183
    %v185 = vpop.f32.mrf.mxu0
    %v186 = vpop.f32.mrf.mxu0
    %v187 = vpop.f32.mrf.mxu0
    %188 = vdwg.mxu0
    %v189 = vmax.f32 %v184, 0.0
    %v190 = vpack.c.bf16 %v189, %v189
    %v191 = vld [vmem:[#allocation7] sm:$0xf]
    %v192 = vld [vmem:[#allocation7 + $0x4] sm:$0xf]
    %v193 = vld [vmem:[#allocation7 + $0x8] sm:$0xf]
    %v194 = vld [vmem:[#allocation7 + $0xc] sm:$0xf]
    %v195 = vld [vmem:[#allocation7 + $0x10] sm:$0xf]
    %v196 = vld [vmem:[#allocation7 + $0x14] sm:$0xf]
    %v197 = vld [vmem:[#allocation7 + $0x18] sm:$0xf]
    %v198 = vld [vmem:[#allocation7 + $0x1c] sm:$0xf]
    %v199 = vld [vmem:[#allocation7 + $0x20] sm:$0xf]
    %v200 = vld [vmem:[#allocation7 + $0x24] sm:$0xf]
    %v201 = vld [vmem:[#allocation7 + $0x28] sm:$0xf]
    %v202 = vld [vmem:[#allocation7 + $0x2c] sm:$0xf]
    %v203 = vld [vmem:[#allocation7 + $0x30] sm:$0xf]
    %v204 = vld [vmem:[#allocation7 + $0x34] sm:$0xf]
    %v205 = vld [vmem:[#allocation7 + $0x38] sm:$0xf]
    %v206 = vld [vmem:[#allocation7 + $0x3c] sm:$0xf]
    %v207 = vld [vmem:[%s6] sm:$0x1]
    %v209 = vlaneseq
    %v210 = vshrl.u32 %v209, 7
    %v211 = vsub.s32 0, %v210
    %v212 = vrot.slane %v207, %v211
    %v230 = vunpack.c.l.b16 %v191
    %v231 = vunpack.c.l.b16 %v192
    %v232 = vunpack.c.l.b16 %v193
    %v233 = vunpack.c.l.b16 %v194
    %v234 = vunpack.c.l.b16 %v195
    %v235 = vunpack.c.l.b16 %v196
    %v236 = vunpack.c.l.b16 %v197
    %v237 = vunpack.c.l.b16 %v198
    %v238 = vunpack.c.l.b16 %v199
    %v239 = vunpack.c.l.b16 %v200
    %v240 = vunpack.c.l.b16 %v201
    %v241 = vunpack.c.l.b16 %v202
    %v242 = vunpack.c.l.b16 %v203
    %v243 = vunpack.c.l.b16 %v204
    %v244 = vunpack.c.l.b16 %v205
    %v245 = vunpack.c.l.b16 %v206
    %v246 = vpack.c.b16 %v231, %v230
    %v247 = vpack.c.b16 %v233, %v232
    %v248 = vpack.c.b16 %v235, %v234
    %v249 = vpack.c.b16 %v237, %v236
    %v250 = vpack.c.b16 %v239, %v238
    %v251 = vpack.c.b16 %v241, %v240
    %v252 = vpack.c.b16 %v243, %v242
    %v253 = vpack.c.b16 %v245, %v244
    %262 = vmatprep.subr.bf16.mxu0 0
    %263 = vmatpush1.bf16.msra.mxu0 %v253
    %264 = vmatprep.subr.bf16.mxu0 0
    %265 = vmatpush1.bf16.msra.mxu0 %v252
    %266 = vmatprep.subr.bf16.mxu0 0
    %267 = vmatpush1.bf16.msra.mxu0 %v251
    %268 = vmatprep.subr.bf16.mxu0 0
    %269 = vmatpush1.bf16.msra.mxu0 %v250
    %270 = vmatprep.subr.bf16.mxu0 0
    %271 = vmatpush1.bf16.msra.mxu0 %v249
    %272 = vmatprep.subr.bf16.mxu0 0
    %273 = vmatpush1.bf16.msra.mxu0 %v248
    %274 = vmatprep.subr.bf16.mxu0 0
    %275 = vmatpush1.bf16.msra.mxu0 %v247
    %276 = vmatprep.subr.bf16.mxu0 0
    %277 = vmatpush1.bf16.msra.mxu0 %v246
    %278 = vmatprep.subr.bf16.mxu0 0
    %279 = vmatpush2.bf16.msra.mxu0 0
    %280 = vmatprep.subr.bf16.mxu0 0
    %281 = vmatpush2.bf16.msra.mxu0 0
    %282 = vmatprep.subr.bf16.mxu0 0
    %283 = vmatpush2.bf16.msra.mxu0 0
    %284 = vmatprep.subr.bf16.mxu0 0
    %285 = vmatpush2.bf16.msra.mxu0 0
    %286 = vmatprep.subr.bf16.mxu0 0
    %287 = vmatpush2.bf16.msra.mxu0 0
    %288 = vmatprep.subr.bf16.mxu0 0
    %289 = vmatpush2.bf16.msra.mxu0 0
    %290 = vmatprep.subr.bf16.mxu0 0
    %291 = vmatpush2.bf16.msra.mxu0 0
    %292 = vmatprep.subr.bf16.mxu0 0
    %293 = vmatpush2.bf16.msra.mxu0 0
    %294 = vmatprep.mubr.bf16.mxu0 0
    %295 = vmatmul.mubr.bf16.gmra.mxu0 %v190
    %v296 = vpop.f32.mrf.mxu0
    %v297 = vadd.f32 %v212, %v296
    %v298 = vpop.f32.mrf.mxu0
    %v299 = vpop.f32.mrf.mxu0
    %v300 = vpop.f32.mrf.mxu0
    %301 = vdwg.mxu0
    %v302 = vmax.f32 %v297, 0.0
    %v303 = vpack.c.bf16 %v302, %v302
    %v304 = vld [vmem:[#allocation8] sm:$0xf]
    %v305 = vld [vmem:[#allocation8 + $0x4] sm:$0xf]
    %v306 = vld [vmem:[#allocation8 + $0x8] sm:$0xf]
    %v307 = vld [vmem:[#allocation8 + $0xc] sm:$0xf]
    %v308 = vld [vmem:[#allocation8 + $0x10] sm:$0xf]
    %v309 = vld [vmem:[#allocation8 + $0x14] sm:$0xf]
    %v310 = vld [vmem:[#allocation8 + $0x18] sm:$0xf]
    %v311 = vld [vmem:[#allocation8 + $0x1c] sm:$0xf]
    %v312 = vld [vmem:[#allocation8 + $0x20] sm:$0xf]
    %v313 = vld [vmem:[#allocation8 + $0x24] sm:$0xf]
    %v314 = vld [vmem:[#allocation8 + $0x28] sm:$0xf]
    %v315 = vld [vmem:[#allocation8 + $0x2c] sm:$0xf]
    %v316 = vld [vmem:[#allocation8 + $0x30] sm:$0xf]
    %v317 = vld [vmem:[#allocation8 + $0x34] sm:$0xf]
    %v318 = vld [vmem:[#allocation8 + $0x38] sm:$0xf]
    %v319 = vld [vmem:[#allocation8 + $0x3c] sm:$0xf]
    %v320 = vld [vmem:[%s8] sm:$0x1]
    %v322 = vlaneseq
    %v323 = vshrl.u32 %v322, 7
    %v324 = vsub.s32 0, %v323
    %v325 = vrot.slane %v320, %v324
    %v343 = vunpack.c.l.b16 %v304
    %v344 = vunpack.c.l.b16 %v305
    %v345 = vunpack.c.l.b16 %v306
    %v346 = vunpack.c.l.b16 %v307
    %v347 = vunpack.c.l.b16 %v308
    %v348 = vunpack.c.l.b16 %v309
    %v349 = vunpack.c.l.b16 %v310
    %v350 = vunpack.c.l.b16 %v311
    %v351 = vunpack.c.l.b16 %v312
    %v352 = vunpack.c.l.b16 %v313
    %v353 = vunpack.c.l.b16 %v314
    %v354 = vunpack.c.l.b16 %v315
    %v355 = vunpack.c.l.b16 %v316
    %v356 = vunpack.c.l.b16 %v317
    %v357 = vunpack.c.l.b16 %v318
    %v358 = vunpack.c.l.b16 %v319
    %v359 = vpack.c.b16 %v344, %v343
    %v360 = vpack.c.b16 %v346, %v345
    %v361 = vpack.c.b16 %v348, %v347
    %v362 = vpack.c.b16 %v350, %v349
    %v363 = vpack.c.b16 %v352, %v351
    %v364 = vpack.c.b16 %v354, %v353
    %v365 = vpack.c.b16 %v356, %v355
    %v366 = vpack.c.b16 %v358, %v357
    %375 = vmatprep.subr.bf16.mxu0 0
    %376 = vmatpush1.bf16.msra.mxu0 %v366
    %377 = vmatprep.subr.bf16.mxu0 0
    %378 = vmatpush1.bf16.msra.mxu0 %v365
    %379 = vmatprep.subr.bf16.mxu0 0
    %380 = vmatpush1.bf16.msra.mxu0 %v364
    %381 = vmatprep.subr.bf16.mxu0 0
    %382 = vmatpush1.bf16.msra.mxu0 %v363
    %383 = vmatprep.subr.bf16.mxu0 0
    %384 = vmatpush1.bf16.msra.mxu0 %v362
    %385 = vmatprep.subr.bf16.mxu0 0
    %386 = vmatpush1.bf16.msra.mxu0 %v361
    %387 = vmatprep.subr.bf16.mxu0 0
    %388 = vmatpush1.bf16.msra.mxu0 %v360
    %389 = vmatprep.subr.bf16.mxu0 0
    %390 = vmatpush1.bf16.msra.mxu0 %v359
    %391 = vmatprep.subr.bf16.mxu0 0
    %392 = vmatpush2.bf16.msra.mxu0 0
    %393 = vmatprep.subr.bf16.mxu0 0
    %394 = vmatpush2.bf16.msra.mxu0 0
    %395 = vmatprep.subr.bf16.mxu0 0
    %396 = vmatpush2.bf16.msra.mxu0 0
    %397 = vmatprep.subr.bf16.mxu0 0
    %398 = vmatpush2.bf16.msra.mxu0 0
    %399 = vmatprep.subr.bf16.mxu0 0
    %400 = vmatpush2.bf16.msra.mxu0 0
    %401 = vmatprep.subr.bf16.mxu0 0
    %402 = vmatpush2.bf16.msra.mxu0 0
    %403 = vmatprep.subr.bf16.mxu0 0
    %404 = vmatpush2.bf16.msra.mxu0 0
    %405 = vmatprep.subr.bf16.mxu0 0
    %406 = vmatpush2.bf16.msra.mxu0 0
    %407 = vmatprep.mubr.bf16.mxu0 0
    %408 = vmatmul.mubr.bf16.gmra.mxu0 %v303
    %v409 = vpop.f32.mrf.mxu0
    %v410 = vadd.f32 %v325, %v409
    %v411 = vpop.f32.mrf.mxu0
    %v412 = vpop.f32.mrf.mxu0
    %v413 = vpop.f32.mrf.mxu0
    %414 = vdwg.mxu0
    %415 = vmax.xlane.f32.xlu0 %v410
    %v416 = vpop.xlane.xlu0 %415
    %v417 = vsub.f32 %v410, %v416
    %v418 = vmul.f32 %v417, 1.442695
    %v419 = vpow.pop %v418
    %420 = vadd.xlane.f32.xlu0 %v419
    %v421 = vpop.xlane.xlu0 %420
    %v422 = vrcp.pop %v421
    %v423 = vmul.f32 %v419, %v422
    %424 = vst [vmem:[#allocation10] sm:$0xff] %v423
    // Predicated region
    $region54: #{mlp_forward_packed.1} parent=1 // pred_check
      _
    $region55: #{mlp_forward_packed.1} parent=1 // pred_check_branch
      %426 = sbr.rel (0) target = $region57
    $region56: #{mlp_forward_packed.1} parent=1 // pred_region
      %s428 = ssub.s32 128, 128
      %429 = vsyncadd [#allocation4], %s428
      %s431 = sshll.u32 [#allocation10], 4
      %s432 = int_to_ptr.vmem [resolvable:$true] %s431
      %434 = dma.vmem_to_hbm [thread:$0]  %s432, 128, %s9, [#allocation4]
    $region57: #{mlp_forward_packed.1} parent=1 // pred_fallthru
      _
    // Predicated region
    $region58: #{mlp_forward_packed.1} parent=1 // pred_check
      _
    $region59: #{mlp_forward_packed.1} parent=1 // pred_check_branch
      %436 = sbr.rel (0) target = $region61
    $region60: #{mlp_forward_packed.1} parent=1 // pred_region
      %437 = dma.done [#allocation4], 128
    $region61: #{mlp_forward_packed.1} parent=1 // pred_fallthru
      _
    %438 = vsyncpa [#allocation3], 1
    %439 = vsyncpa [#allocation6], 1
    %440 = vsyncpa [#allocation9], 1
    %441 = vsyncpa [#allocation4], 1

</llo_original>
